<compile_context>
chip_gen: v7x
topology: tpu7x:2x2x1
jax: 0.10.0
libtpu: 0.0.40
codegen_flags: <defaults>
</compile_context>

<pallas_src>
import jax
import jax.numpy as jnp
from jax.experimental import pallas as pl
from jax.experimental.pallas import tpu as pltpu  # noqa: F401  (TPU backend)

NUM_EMBED = 50  # nn.Embedding(50, num_pos_feats)


def _pos_embed_kernel(col_ref, row_ref, out_ref):
    """Two sliced stores, channels-first, no wrapper transpose needed.

    col_ref: (F, 1, W)  col_embed[:W].T with a size-1 row axis   (x_emb)
    row_ref: (F, H, 1)  row_embed[:H].T with a size-1 col axis   (y_emb)
    out_ref: (2F, H, W) positional-encoding slab (batch-independent)
    """
    two_f, H, W = out_ref.shape
    F = two_f // 2
    # Channels [0:F]  : x_emb[w, f] repeated over rows  (sublane broadcast 1 -> H)
    out_ref[:F] = jnp.broadcast_to(col_ref[...], (F, H, W))
    # Channels [F:2F] : y_emb[h, f] repeated over cols  (lane broadcast 1 -> W)
    out_ref[F:] = jnp.broadcast_to(row_ref[...], (F, H, W))


def position_embedding_learned(x, col_embed, row_embed):
    """x: (B, C, H, W); returns pos: (B, 2F, H, W) float32 (matches torch module)."""
    B, _, H, W = x.shape
    F = col_embed.shape[1]
    two_f = 2 * F

    # Inherited from the PyTorch module: embedding tables have 50 rows, so the
    # spatial dims must satisfy H, W <= 50 (trace-time check, intentional).
    assert H <= NUM_EMBED and W <= NUM_EMBED, (H, W)

    # Embedding lookup with arange indices == leading slice; the transposes are
    # on the tiny (<=50, F) tables only (cheap XLA ops, not the full slab).
    col_in = col_embed[:W].T[:, None, :]   # (F, 1, W)
    row_in = row_embed[:H].T[:, :, None]   # (F, H, 1)

    out_bytes = two_f * H * W * 4
    in_bytes = (F * W + F * H) * 4

    # Single block: whole slab is at most ~5 MiB (H,W<=50), fits VMEM on all
    # chips, so no grid / tiling machinery.  The kernel emits the final
    # channels-first layout directly.
    pos_chw = pl.pallas_call(
        _pos_embed_kernel,
        out_shape=jax.ShapeDtypeStruct((two_f, H, W), jnp.float32),
        cost_estimate=pl.CostEstimate(
            flops=0, transcendentals=0, bytes_accessed=out_bytes + in_bytes),
    )(col_in, row_in)

    # The .repeat(B,1,1,1) of the torch module: zero-copy batch broadcast.
    return jnp.broadcast_to(pos_chw[None], (B, two_f, H, W))


def _reference(x, col_embed, row_embed):
    """Pure-JAX reference mirroring the torch forward."""
    B, _, H, W = x.shape
    x_emb = col_embed[jnp.arange(W)]                       # (W, F)
    y_emb = row_embed[jnp.arange(H)]                       # (H, F)
    pos = jnp.concatenate(
        [jnp.broadcast_to(x_emb[None, :, :], (H, W, x_emb.shape[-1])),
         jnp.broadcast_to(y_emb[:, None, :], (H, W, y_emb.shape[-1]))],
        axis=-1)                                           # (H, W, 2F)
    pos = jnp.transpose(pos, (2, 0, 1))                    # (2F, H, W)
    return jnp.broadcast_to(pos[None], (B,) + pos.shape)   # (B, 2F, H, W)


if __name__ == "__main__":
    B, C, H, W = 2, 4, 16, 16
    num_pos_feats = 32  # small F for the synthetic test

    key = jax.random.PRNGKey(0)
    k_x, k_row, k_col = jax.random.split(key, 3)

    x = jax.random.normal(k_x, (B, C, H, W), dtype=jnp.float32)
    # nn.init.uniform_ -> U[0, 1)
    row_embed = jax.random.uniform(k_row, (NUM_EMBED, num_pos_feats), dtype=jnp.float32)
    col_embed = jax.random.uniform(k_col, (NUM_EMBED, num_pos_feats), dtype=jnp.float32)

    pos = position_embedding_learned(x, col_embed, row_embed)
    pos = jax.block_until_ready(pos)

    ref = _reference(x, col_embed, row_embed)
    assert pos.shape == (B, 2 * num_pos_feats, H, W), pos.shape
    assert jnp.allclose(pos, ref), "mismatch vs reference"

    print("KERNEL_OK")
</pallas_src>

<mosaic_0001>
module attributes {stable_mosaic.version = 11 : i64} {
  func.func @_pos_embed_kernel(%arg0: memref<32x1x16xf32, #tpu.memory_space<vmem>>, %arg1: memref<32x16x1xf32, #tpu.memory_space<vmem>>, %arg2: memref<64x16x16xf32, #tpu.memory_space<vmem>>) attributes {dimension_semantics = [], scalar_prefetch = 0 : i64, scratch_operands = 0 : i64, tpu.core_type = #tpu.core_type<tc>} {
    %c0 = arith.constant 0 : index
    %c0_0 = arith.constant 0 : index
    %c0_1 = arith.constant 0 : index
    %0 = vector.load %arg0[%c0, %c0_0, %c0_1] : memref<32x1x16xf32, #tpu.memory_space<vmem>>, vector<32x1x16xf32>
    %1 = vector.shape_cast %0 : vector<32x1x16xf32> to vector<32x1x16xf32>
    %2 = vector.broadcast %1 : vector<32x1x16xf32> to vector<32x16x16xf32>
    %c0_2 = arith.constant 0 : index
    %c0_3 = arith.constant 0 : index
    %c0_4 = arith.constant 0 : index
    %3 = vector.load %arg2[%c0_2, %c0_3, %c0_4] : memref<64x16x16xf32, #tpu.memory_space<vmem>>, vector<32x16x16xf32>
    tpu.vector_store %arg2[%c0_2, %c0_3, %c0_4], %2 {strides = array<i32>} : memref<64x16x16xf32, #tpu.memory_space<vmem>>, vector<32x16x16xf32>,
    %c0_5 = arith.constant 0 : index
    %c0_6 = arith.constant 0 : index
    %c0_7 = arith.constant 0 : index
    %4 = vector.load %arg1[%c0_5, %c0_6, %c0_7] : memref<32x16x1xf32, #tpu.memory_space<vmem>>, vector<32x16x1xf32>
    %5 = vector.shape_cast %4 : vector<32x16x1xf32> to vector<32x16x1xf32>
    %6 = vector.broadcast %5 : vector<32x16x1xf32> to vector<32x16x16xf32>
    %c32 = arith.constant 32 : index
    %c0_8 = arith.constant 0 : index
    %c0_9 = arith.constant 0 : index
    %7 = vector.load %arg2[%c32, %c0_8, %c0_9] : memref<64x16x16xf32, #tpu.memory_space<vmem>>, vector<32x16x16xf32>
    tpu.vector_store %arg2[%c32, %c0_8, %c0_9], %6 {strides = array<i32>} : memref<64x16x16xf32, #tpu.memory_space<vmem>>, vector<32x16x16xf32>,
    return
  }
}

</mosaic_0001>

<llo_original>
// kernel: tpu_custom_call.1
$region0: #{tpu_custom_call.1}
  #allocation0 [shape = 'u32[]', space=smem, size = 0x4, offset = 0x4, fixed_abs, tag = 'smem constant byte address 0x4 - core index']
  #allocation1 [shape = 'u32[144,128]{1,0:T(1,128)}', space=vmem, size = 0x12000, scoped, tag = 'internal scratch']
  %s0 = inlined_call_operand.vmem [shape: f32[32,1,16], index: 0, kind: input, shape index: {}]
  %s1 = inlined_call_operand.vmem [shape: f32[32,16,1], index: 1, kind: input, shape index: {}]
  %s2 = inlined_call_operand.vmem [shape: f32[64,16,16], index: 2, kind: output, shape index: {}]
  %s3 = sld [smem:[#allocation0]]
  $region18: #{tpu_custom_call.1} parent=0
    _
  %s5 = ssub.s32 1, %s3
  %s6 = scalar_select 0, %s5, %s3
  // Predicated region
  $region2: #{tpu_custom_call.1} parent=0 // pred_check
    _
  $region3: #{tpu_custom_call.1} parent=0 // pred_check_branch
    %8 = sbr.rel (0) target = $region5
  $region4: #{tpu_custom_call.1} parent=0 // pred_region
    _
  $region5: #{tpu_custom_call.1} parent=0 // pred_fallthru
    _
  // Predicated region
  $region6: #{tpu_custom_call.1} parent=0 // pred_check
    _
  $region7: #{tpu_custom_call.1} parent=0 // pred_check_branch
    %10 = sbr.rel (0) target = $region9
  $region8: #{tpu_custom_call.1} parent=0 // pred_region
    _
  $region9: #{tpu_custom_call.1} parent=0 // pred_fallthru
    _
  %v11 = vld [vmem:[%s0] sm:$0x1]
  %v12 = vld [vmem:[%s0 + $0x1] sm:$0x1]
  %v13 = vld [vmem:[%s0 + $0x2] sm:$0x1]
  %v14 = vld [vmem:[%s0 + $0x3] sm:$0x1]
  %v15 = vld [vmem:[%s0 + $0x4] sm:$0x1]
  %v16 = vld [vmem:[%s0 + $0x5] sm:$0x1]
  %v17 = vld [vmem:[%s0 + $0x6] sm:$0x1]
  %v18 = vld [vmem:[%s0 + $0x7] sm:$0x1]
  %v19 = vld [vmem:[%s0 + $0x8] sm:$0x1]
  %v20 = vld [vmem:[%s0 + $0x9] sm:$0x1]
  %v21 = vld [vmem:[%s0 + $0xa] sm:$0x1]
  %v22 = vld [vmem:[%s0 + $0xb] sm:$0x1]
  %v23 = vld [vmem:[%s0 + $0xc] sm:$0x1]
  %v24 = vld [vmem:[%s0 + $0xd] sm:$0x1]
  %v25 = vld [vmem:[%s0 + $0xe] sm:$0x1]
  %v26 = vld [vmem:[%s0 + $0xf] sm:$0x1]
  %v27 = vld [vmem:[%s0 + $0x10] sm:$0x1]
  %v28 = vld [vmem:[%s0 + $0x11] sm:$0x1]
  %v29 = vld [vmem:[%s0 + $0x12] sm:$0x1]
  %v30 = vld [vmem:[%s0 + $0x13] sm:$0x1]
  %v31 = vld [vmem:[%s0 + $0x14] sm:$0x1]
  %v32 = vld [vmem:[%s0 + $0x15] sm:$0x1]
  %v33 = vld [vmem:[%s0 + $0x16] sm:$0x1]
  %v34 = vld [vmem:[%s0 + $0x17] sm:$0x1]
  %v35 = vld [vmem:[%s0 + $0x18] sm:$0x1]
  %v36 = vld [vmem:[%s0 + $0x19] sm:$0x1]
  %v37 = vld [vmem:[%s0 + $0x1a] sm:$0x1]
  %v38 = vld [vmem:[%s0 + $0x1b] sm:$0x1]
  %v39 = vld [vmem:[%s0 + $0x1c] sm:$0x1]
  %v40 = vld [vmem:[%s0 + $0x1d] sm:$0x1]
  %v41 = vld [vmem:[%s0 + $0x1e] sm:$0x1]
  %v42 = vld [vmem:[%s0 + $0x1f] sm:$0x1]
  %v75 = vlaneseq
  %v76 = vshrl.u32 %v75, 7
  %v77 = vsub.s32 0, %v76
  %v78 = vrot.slane %v11, %v77
  %v79 = vlaneseq
  %v80 = vshrl.u32 %v79, 7
  %v81 = vsub.s32 0, %v80
  %v82 = vrot.slane %v12, %v81
  %v83 = vlaneseq
  %v84 = vshrl.u32 %v83, 7
  %v85 = vsub.s32 0, %v84
  %v86 = vrot.slane %v13, %v85
  %v87 = vlaneseq
  %v88 = vshrl.u32 %v87, 7
  %v89 = vsub.s32 0, %v88
  %v90 = vrot.slane %v14, %v89
  %v91 = vlaneseq
  %v92 = vshrl.u32 %v91, 7
  %v93 = vsub.s32 0, %v92
  %v94 = vrot.slane %v15, %v93
  %v95 = vlaneseq
  %v96 = vshrl.u32 %v95, 7
  %v97 = vsub.s32 0, %v96
  %v98 = vrot.slane %v16, %v97
  %v99 = vlaneseq
  %v100 = vshrl.u32 %v99, 7
  %v101 = vsub.s32 0, %v100
  %v102 = vrot.slane %v17, %v101
  %v103 = vlaneseq
  %v104 = vshrl.u32 %v103, 7
  %v105 = vsub.s32 0, %v104
  %v106 = vrot.slane %v18, %v105
  %v107 = vlaneseq
  %v108 = vshrl.u32 %v107, 7
  %v109 = vsub.s32 0, %v108
  %v110 = vrot.slane %v19, %v109
  %v111 = vlaneseq
  %v112 = vshrl.u32 %v111, 7
  %v113 = vsub.s32 0, %v112
  %v114 = vrot.slane %v20, %v113
  %v115 = vlaneseq
  %v116 = vshrl.u32 %v115, 7
  %v117 = vsub.s32 0, %v116
  %v118 = vrot.slane %v21, %v117
  %v119 = vlaneseq
  %v120 = vshrl.u32 %v119, 7
  %v121 = vsub.s32 0, %v120
  %v122 = vrot.slane %v22, %v121
  %v123 = vlaneseq
  %v124 = vshrl.u32 %v123, 7
  %v125 = vsub.s32 0, %v124
  %v126 = vrot.slane %v23, %v125
  %v127 = vlaneseq
  %v128 = vshrl.u32 %v127, 7
  %v129 = vsub.s32 0, %v128
  %v130 = vrot.slane %v24, %v129
  %v131 = vlaneseq
  %v132 = vshrl.u32 %v131, 7
  %v133 = vsub.s32 0, %v132
  %v134 = vrot.slane %v25, %v133
  %v135 = vlaneseq
  %v136 = vshrl.u32 %v135, 7
  %v137 = vsub.s32 0, %v136
  %v138 = vrot.slane %v26, %v137
  %v139 = vlaneseq
  %v140 = vshrl.u32 %v139, 7
  %v141 = vsub.s32 0, %v140
  %v142 = vrot.slane %v27, %v141
  %v143 = vlaneseq
  %v144 = vshrl.u32 %v143, 7
  %v145 = vsub.s32 0, %v144
  %v146 = vrot.slane %v28, %v145
  %v147 = vlaneseq
  %v148 = vshrl.u32 %v147, 7
  %v149 = vsub.s32 0, %v148
  %v150 = vrot.slane %v29, %v149
  %v151 = vlaneseq
  %v152 = vshrl.u32 %v151, 7
  %v153 = vsub.s32 0, %v152
  %v154 = vrot.slane %v30, %v153
  %v155 = vlaneseq
  %v156 = vshrl.u32 %v155, 7
  %v157 = vsub.s32 0, %v156
  %v158 = vrot.slane %v31, %v157
  %v159 = vlaneseq
  %v160 = vshrl.u32 %v159, 7
  %v161 = vsub.s32 0, %v160
  %v162 = vrot.slane %v32, %v161
  %v163 = vlaneseq
  %v164 = vshrl.u32 %v163, 7
  %v165 = vsub.s32 0, %v164
  %v166 = vrot.slane %v33, %v165
  %v167 = vlaneseq
  %v168 = vshrl.u32 %v167, 7
  %v169 = vsub.s32 0, %v168
  %v170 = vrot.slane %v34, %v169
  %v171 = vlaneseq
  %v172 = vshrl.u32 %v171, 7
  %v173 = vsub.s32 0, %v172
  %v174 = vrot.slane %v35, %v173
  %v175 = vlaneseq
  %v176 = vshrl.u32 %v175, 7
  %v177 = vsub.s32 0, %v176
  %v178 = vrot.slane %v36, %v177
  %v179 = vlaneseq
  %v180 = vshrl.u32 %v179, 7
  %v181 = vsub.s32 0, %v180
  %v182 = vrot.slane %v37, %v181
  %v183 = vlaneseq
  %v184 = vshrl.u32 %v183, 7
  %v185 = vsub.s32 0, %v184
  %v186 = vrot.slane %v38, %v185
  %v187 = vlaneseq
  %v188 = vshrl.u32 %v187, 7
  %v189 = vsub.s32 0, %v188
  %v190 = vrot.slane %v39, %v189
  %v191 = vlaneseq
  %v192 = vshrl.u32 %v191, 7
  %v193 = vsub.s32 0, %v192
  %v194 = vrot.slane %v40, %v193
  %v195 = vlaneseq
  %v196 = vshrl.u32 %v195, 7
  %v197 = vsub.s32 0, %v196
  %v198 = vrot.slane %v41, %v197
  %v199 = vlaneseq
  %v200 = vshrl.u32 %v199, 7
  %v201 = vsub.s32 0, %v200
  %v202 = vrot.slane %v42, %v201
  %vm235 = vcmask 130048
  %236 = vst.msk [vmem:[%s2] sm:$0xff] %vm235, %v78
  %237 = vst.msk [vmem:[%s2 + $0x8] sm:$0xff] %vm235, %v78
  %238 = vst.msk [vmem:[%s2 + $0x10] sm:$0xff] %vm235, %v82
  %239 = vst.msk [vmem:[%s2 + $0x18] sm:$0xff] %vm235, %v82
  %240 = vst.msk [vmem:[%s2 + $0x20] sm:$0xff] %vm235, %v86
  %241 = vst.msk [vmem:[%s2 + $0x28] sm:$0xff] %vm235, %v86
  %242 = vst.msk [vmem:[%s2 + $0x30] sm:$0xff] %vm235, %v90
  %243 = vst.msk [vmem:[%s2 + $0x38] sm:$0xff] %vm235, %v90
  %244 = vst.msk [vmem:[%s2 + $0x40] sm:$0xff] %vm235, %v94
  %245 = vst.msk [vmem:[%s2 + $0x48] sm:$0xff] %vm235, %v94
  %246 = vst.msk [vmem:[%s2 + $0x50] sm:$0xff] %vm235, %v98
  %247 = vst.msk [vmem:[%s2 + $0x58] sm:$0xff] %vm235, %v98
  %248 = vst.msk [vmem:[%s2 + $0x60] sm:$0xff] %vm235, %v102
  %249 = vst.msk [vmem:[%s2 + $0x68] sm:$0xff] %vm235, %v102
  %250 = vst.msk [vmem:[%s2 + $0x70] sm:$0xff] %vm235, %v106
  %251 = vst.msk [vmem:[%s2 + $0x78] sm:$0xff] %vm235, %v106
  %252 = vst.msk [vmem:[%s2 + $0x80] sm:$0xff] %vm235, %v110
  %253 = vst.msk [vmem:[%s2 + $0x88] sm:$0xff] %vm235, %v110
  %254 = vst.msk [vmem:[%s2 + $0x90] sm:$0xff] %vm235, %v114
  %255 = vst.msk [vmem:[%s2 + $0x98] sm:$0xff] %vm235, %v114
  %256 = vst.msk [vmem:[%s2 + $0xa0] sm:$0xff] %vm235, %v118
  %257 = vst.msk [vmem:[%s2 + $0xa8] sm:$0xff] %vm235, %v118
  %258 = vst.msk [vmem:[%s2 + $0xb0] sm:$0xff] %vm235, %v122
  %259 = vst.msk [vmem:[%s2 + $0xb8] sm:$0xff] %vm235, %v122
  %260 = vst.msk [vmem:[%s2 + $0xc0] sm:$0xff] %vm235, %v126
  %261 = vst.msk [vmem:[%s2 + $0xc8] sm:$0xff] %vm235, %v126
  %262 = vst.msk [vmem:[%s2 + $0xd0] sm:$0xff] %vm235, %v130
  %263 = vst.msk [vmem:[%s2 + $0xd8] sm:$0xff] %vm235, %v130
  %264 = vst.msk [vmem:[%s2 + $0xe0] sm:$0xff] %vm235, %v134
  %265 = vst.msk [vmem:[%s2 + $0xe8] sm:$0xff] %vm235, %v134
  %266 = vst.msk [vmem:[%s2 + $0xf0] sm:$0xff] %vm235, %v138
  %267 = vst.msk [vmem:[%s2 + $0xf8] sm:$0xff] %vm235, %v138
  %268 = vst.msk [vmem:[%s2 + $0x100] sm:$0xff] %vm235, %v142
  %269 = vst.msk [vmem:[%s2 + $0x108] sm:$0xff] %vm235, %v142
  %270 = vst.msk [vmem:[%s2 + $0x110] sm:$0xff] %vm235, %v146
  %271 = vst.msk [vmem:[%s2 + $0x118] sm:$0xff] %vm235, %v146
  %272 = vst.msk [vmem:[%s2 + $0x120] sm:$0xff] %vm235, %v150
  %273 = vst.msk [vmem:[%s2 + $0x128] sm:$0xff] %vm235, %v150
  %274 = vst.msk [vmem:[%s2 + $0x130] sm:$0xff] %vm235, %v154
  %275 = vst.msk [vmem:[%s2 + $0x138] sm:$0xff] %vm235, %v154
  %276 = vst.msk [vmem:[%s2 + $0x140] sm:$0xff] %vm235, %v158
  %277 = vst.msk [vmem:[%s2 + $0x148] sm:$0xff] %vm235, %v158
  %278 = vst.msk [vmem:[%s2 + $0x150] sm:$0xff] %vm235, %v162
  %279 = vst.msk [vmem:[%s2 + $0x158] sm:$0xff] %vm235, %v162
  %280 = vst.msk [vmem:[%s2 + $0x160] sm:$0xff] %vm235, %v166
  %281 = vst.msk [vmem:[%s2 + $0x168] sm:$0xff] %vm235, %v166
  %282 = vst.msk [vmem:[%s2 + $0x170] sm:$0xff] %vm235, %v170
  %283 = vst.msk [vmem:[%s2 + $0x178] sm:$0xff] %vm235, %v170
  %284 = vst.msk [vmem:[%s2 + $0x180] sm:$0xff] %vm235, %v174
  %285 = vst.msk [vmem:[%s2 + $0x188] sm:$0xff] %vm235, %v174
  %286 = vst.msk [vmem:[%s2 + $0x190] sm:$0xff] %vm235, %v178
  %287 = vst.msk [vmem:[%s2 + $0x198] sm:$0xff] %vm235, %v178
  %288 = vst.msk [vmem:[%s2 + $0x1a0] sm:$0xff] %vm235, %v182
  %289 = vst.msk [vmem:[%s2 + $0x1a8] sm:$0xff] %vm235, %v182
  %290 = vst.msk [vmem:[%s2 + $0x1b0] sm:$0xff] %vm235, %v186
  %291 = vst.msk [vmem:[%s2 + $0x1b8] sm:$0xff] %vm235, %v186
  %292 = vst.msk [vmem:[%s2 + $0x1c0] sm:$0xff] %vm235, %v190
  %293 = vst.msk [vmem:[%s2 + $0x1c8] sm:$0xff] %vm235, %v190
  %294 = vst.msk [vmem:[%s2 + $0x1d0] sm:$0xff] %vm235, %v194
  %295 = vst.msk [vmem:[%s2 + $0x1d8] sm:$0xff] %vm235, %v194
  %296 = vst.msk [vmem:[%s2 + $0x1e0] sm:$0xff] %vm235, %v198
  %297 = vst.msk [vmem:[%s2 + $0x1e8] sm:$0xff] %vm235, %v198
  %298 = vst.msk [vmem:[%s2 + $0x1f0] sm:$0xff] %vm235, %v202
  %299 = vst.msk [vmem:[%s2 + $0x1f8] sm:$0xff] %vm235, %v202
  %v300 = vld [vmem:[%s1] sm:$0xff]
  %v301 = vld [vmem:[%s1 + $0x8] sm:$0xff]
  %v302 = vld [vmem:[%s1 + $0x10] sm:$0xff]
  %v303 = vld [vmem:[%s1 + $0x18] sm:$0xff]
  %v304 = vld [vmem:[%s1 + $0x20] sm:$0xff]
  %v305 = vld [vmem:[%s1 + $0x28] sm:$0xff]
  %v306 = vld [vmem:[%s1 + $0x30] sm:$0xff]
  %v307 = vld [vmem:[%s1 + $0x38] sm:$0xff]
  %v308 = vld [vmem:[%s1 + $0x40] sm:$0xff]
  %v309 = vld [vmem:[%s1 + $0x48] sm:$0xff]
  %v310 = vld [vmem:[%s1 + $0x50] sm:$0xff]
  %v311 = vld [vmem:[%s1 + $0x58] sm:$0xff]
  %v312 = vld [vmem:[%s1 + $0x60] sm:$0xff]
  %v313 = vld [vmem:[%s1 + $0x68] sm:$0xff]
  %v314 = vld [vmem:[%s1 + $0x70] sm:$0xff]
  %v315 = vld [vmem:[%s1 + $0x78] sm:$0xff]
  %v316 = vld [vmem:[%s1 + $0x80] sm:$0xff]
  %v317 = vld [vmem:[%s1 + $0x88] sm:$0xff]
  %v318 = vld [vmem:[%s1 + $0x90] sm:$0xff]
  %v319 = vld [vmem:[%s1 + $0x98] sm:$0xff]
  %v320 = vld [vmem:[%s1 + $0xa0] sm:$0xff]
  %v321 = vld [vmem:[%s1 + $0xa8] sm:$0xff]
  %v322 = vld [vmem:[%s1 + $0xb0] sm:$0xff]
  %v323 = vld [vmem:[%s1 + $0xb8] sm:$0xff]
  %v324 = vld [vmem:[%s1 + $0xc0] sm:$0xff]
  %v325 = vld [vmem:[%s1 + $0xc8] sm:$0xff]
  %v326 = vld [vmem:[%s1 + $0xd0] sm:$0xff]
  %v327 = vld [vmem:[%s1 + $0xd8] sm:$0xff]
  %v328 = vld [vmem:[%s1 + $0xe0] sm:$0xff]
  %v329 = vld [vmem:[%s1 + $0xe8] sm:$0xff]
  %v330 = vld [vmem:[%s1 + $0xf0] sm:$0xff]
  %v331 = vld [vmem:[%s1 + $0xf8] sm:$0xff]
  %v332 = vld [vmem:[%s1 + $0x100] sm:$0xff]
  %v333 = vld [vmem:[%s1 + $0x108] sm:$0xff]
  %v334 = vld [vmem:[%s1 + $0x110] sm:$0xff]
  %v335 = vld [vmem:[%s1 + $0x118] sm:$0xff]
  %v336 = vld [vmem:[%s1 + $0x120] sm:$0xff]
  %v337 = vld [vmem:[%s1 + $0x128] sm:$0xff]
  %v338 = vld [vmem:[%s1 + $0x130] sm:$0xff]
  %v339 = vld [vmem:[%s1 + $0x138] sm:$0xff]
  %v340 = vld [vmem:[%s1 + $0x140] sm:$0xff]
  %v341 = vld [vmem:[%s1 + $0x148] sm:$0xff]
  %v342 = vld [vmem:[%s1 + $0x150] sm:$0xff]
  %v343 = vld [vmem:[%s1 + $0x158] sm:$0xff]
  %v344 = vld [vmem:[%s1 + $0x160] sm:$0xff]
  %v345 = vld [vmem:[%s1 + $0x168] sm:$0xff]
  %v346 = vld [vmem:[%s1 + $0x170] sm:$0xff]
  %v347 = vld [vmem:[%s1 + $0x178] sm:$0xff]
  %v348 = vld [vmem:[%s1 + $0x180] sm:$0xff]
  %v349 = vld [vmem:[%s1 + $0x188] sm:$0xff]
  %v350 = vld [vmem:[%s1 + $0x190] sm:$0xff]
  %v351 = vld [vmem:[%s1 + $0x198] sm:$0xff]
  %v352 = vld [vmem:[%s1 + $0x1a0] sm:$0xff]
  %v353 = vld [vmem:[%s1 + $0x1a8] sm:$0xff]
  %v354 = vld [vmem:[%s1 + $0x1b0] sm:$0xff]
  %v355 = vld [vmem:[%s1 + $0x1b8] sm:$0xff]
  %v356 = vld [vmem:[%s1 + $0x1c0] sm:$0xff]
  %v357 = vld [vmem:[%s1 + $0x1c8] sm:$0xff]
  %v358 = vld [vmem:[%s1 + $0x1d0] sm:$0xff]
  %v359 = vld [vmem:[%s1 + $0x1d8] sm:$0xff]
  %v360 = vld [vmem:[%s1 + $0x1e0] sm:$0xff]
  %v361 = vld [vmem:[%s1 + $0x1e8] sm:$0xff]
  %v362 = vld [vmem:[%s1 + $0x1f0] sm:$0xff]
  %v363 = vld [vmem:[%s1 + $0x1f8] sm:$0xff]
  %365 = vset.pattern.permute.xlu0 0
  %366 = vperm.xlu0 %365, %v300
  %v367 = vpop.permute.xlu0 %366
  %370 = vset.pattern.permute.xlu0 0
  %371 = vperm.xlu0 %370, %v301
  %v372 = vpop.permute.xlu0 %371
  %375 = vset.pattern.permute.xlu0 0
  %376 = vperm.xlu0 %375, %v302
  %v377 = vpop.permute.xlu0 %376
  %380 = vset.pattern.permute.xlu0 0
  %381 = vperm.xlu0 %380, %v303
  %v382 = vpop.permute.xlu0 %381
  %385 = vset.pattern.permute.xlu0 0
  %386 = vperm.xlu0 %385, %v304
  %v387 = vpop.permute.xlu0 %386
  %390 = vset.pattern.permute.xlu0 0
  %391 = vperm.xlu0 %390, %v305
  %v392 = vpop.permute.xlu0 %391
  %395 = vset.pattern.permute.xlu0 0
  %396 = vperm.xlu0 %395, %v306
  %v397 = vpop.permute.xlu0 %396
  %400 = vset.pattern.permute.xlu0 0
  %401 = vperm.xlu0 %400, %v307
  %v402 = vpop.permute.xlu0 %401
  %405 = vset.pattern.permute.xlu0 0
  %406 = vperm.xlu0 %405, %v308
  %v407 = vpop.permute.xlu0 %406
  %410 = vset.pattern.permute.xlu0 0
  %411 = vperm.xlu0 %410, %v309
  %v412 = vpop.permute.xlu0 %411
  %415 = vset.pattern.permute.xlu0 0
  %416 = vperm.xlu0 %415, %v310
  %v417 = vpop.permute.xlu0 %416
  %420 = vset.pattern.permute.xlu0 0
  %421 = vperm.xlu0 %420, %v311
  %v422 = vpop.permute.xlu0 %421
  %425 = vset.pattern.permute.xlu0 0
  %426 = vperm.xlu0 %425, %v312
  %v427 = vpop.permute.xlu0 %426
  %430 = vset.pattern.permute.xlu0 0
  %431 = vperm.xlu0 %430, %v313
  %v432 = vpop.permute.xlu0 %431
  %435 = vset.pattern.permute.xlu0 0
  %436 = vperm.xlu0 %435, %v314
  %v437 = vpop.permute.xlu0 %436
  %440 = vset.pattern.permute.xlu0 0
  %441 = vperm.xlu0 %440, %v315
  %v442 = vpop.permute.xlu0 %441
  %445 = vset.pattern.permute.xlu0 0
  %446 = vperm.xlu0 %445, %v316
  %v447 = vpop.permute.xlu0 %446
  %450 = vset.pattern.permute.xlu0 0
  %451 = vperm.xlu0 %450, %v317
  %v452 = vpop.permute.xlu0 %451
  %455 = vset.pattern.permute.xlu0 0
  %456 = vperm.xlu0 %455, %v318
  %v457 = vpop.permute.xlu0 %456
  %460 = vset.pattern.permute.xlu0 0
  %461 = vperm.xlu0 %460, %v319
  %v462 = vpop.permute.xlu0 %461
  %465 = vset.pattern.permute.xlu0 0
  %466 = vperm.xlu0 %465, %v320
  %v467 = vpop.permute.xlu0 %466
  %470 = vset.pattern.permute.xlu0 0
  %471 = vperm.xlu0 %470, %v321
  %v472 = vpop.permute.xlu0 %471
  %475 = vset.pattern.permute.xlu0 0
  %476 = vperm.xlu0 %475, %v322
  %v477 = vpop.permute.xlu0 %476
  %480 = vset.pattern.permute.xlu0 0
  %481 = vperm.xlu0 %480, %v323
  %v482 = vpop.permute.xlu0 %481
  %485 = vset.pattern.permute.xlu0 0
  %486 = vperm.xlu0 %485, %v324
  %v487 = vpop.permute.xlu0 %486
  %490 = vset.pattern.permute.xlu0 0
  %491 = vperm.xlu0 %490, %v325
  %v492 = vpop.permute.xlu0 %491
  %495 = vset.pattern.permute.xlu0 0
  %496 = vperm.xlu0 %495, %v326
  %v497 = vpop.permute.xlu0 %496
  %500 = vset.pattern.permute.xlu0 0
  %501 = vperm.xlu0 %500, %v327
  %v502 = vpop.permute.xlu0 %501
  %505 = vset.pattern.permute.xlu0 0
  %506 = vperm.xlu0 %505, %v328
  %v507 = vpop.permute.xlu0 %506
  %510 = vset.pattern.permute.xlu0 0
  %511 = vperm.xlu0 %510, %v329
  %v512 = vpop.permute.xlu0 %511
  %515 = vset.pattern.permute.xlu0 0
  %516 = vperm.xlu0 %515, %v330
  %v517 = vpop.permute.xlu0 %516
  %520 = vset.pattern.permute.xlu0 0
  %521 = vperm.xlu0 %520, %v331
  %v522 = vpop.permute.xlu0 %521
  %525 = vset.pattern.permute.xlu0 0
  %526 = vperm.xlu0 %525, %v332
  %v527 = vpop.permute.xlu0 %526
  %530 = vset.pattern.permute.xlu0 0
  %531 = vperm.xlu0 %530, %v333
  %v532 = vpop.permute.xlu0 %531
  %535 = vset.pattern.permute.xlu0 0
  %536 = vperm.xlu0 %535, %v334
  %v537 = vpop.permute.xlu0 %536
  %540 = vset.pattern.permute.xlu0 0
  %541 = vperm.xlu0 %540, %v335
  %v542 = vpop.permute.xlu0 %541
  %545 = vset.pattern.permute.xlu0 0
  %546 = vperm.xlu0 %545, %v336
  %v547 = vpop.permute.xlu0 %546
  %550 = vset.pattern.permute.xlu0 0
  %551 = vperm.xlu0 %550, %v337
  %v552 = vpop.permute.xlu0 %551
  %555 = vset.pattern.permute.xlu0 0
  %556 = vperm.xlu0 %555, %v338
  %v557 = vpop.permute.xlu0 %556
  %560 = vset.pattern.permute.xlu0 0
  %561 = vperm.xlu0 %560, %v339
  %v562 = vpop.permute.xlu0 %561
  %565 = vset.pattern.permute.xlu0 0
  %566 = vperm.xlu0 %565, %v340
  %v567 = vpop.permute.xlu0 %566
  %570 = vset.pattern.permute.xlu0 0
  %571 = vperm.xlu0 %570, %v341
  %v572 = vpop.permute.xlu0 %571
  %575 = vset.pattern.permute.xlu0 0
  %576 = vperm.xlu0 %575, %v342
  %v577 = vpop.permute.xlu0 %576
  %580 = vset.pattern.permute.xlu0 0
  %581 = vperm.xlu0 %580, %v343
  %v582 = vpop.permute.xlu0 %581
  %585 = vset.pattern.permute.xlu0 0
  %586 = vperm.xlu0 %585, %v344
  %v587 = vpop.permute.xlu0 %586
  %590 = vset.pattern.permute.xlu0 0
  %591 = vperm.xlu0 %590, %v345
  %v592 = vpop.permute.xlu0 %591
  %595 = vset.pattern.permute.xlu0 0
  %596 = vperm.xlu0 %595, %v346
  %v597 = vpop.permute.xlu0 %596
  %600 = vset.pattern.permute.xlu0 0
  %601 = vperm.xlu0 %600, %v347
  %v602 = vpop.permute.xlu0 %601
  %605 = vset.pattern.permute.xlu0 0
  %606 = vperm.xlu0 %605, %v348
  %v607 = vpop.permute.xlu0 %606
  %610 = vset.pattern.permute.xlu0 0
  %611 = vperm.xlu0 %610, %v349
  %v612 = vpop.permute.xlu0 %611
  %615 = vset.pattern.permute.xlu0 0
  %616 = vperm.xlu0 %615, %v350
  %v617 = vpop.permute.xlu0 %616
  %620 = vset.pattern.permute.xlu0 0
  %621 = vperm.xlu0 %620, %v351
  %v622 = vpop.permute.xlu0 %621
  %625 = vset.pattern.permute.xlu0 0
  %626 = vperm.xlu0 %625, %v352
  %v627 = vpop.permute.xlu0 %626
  %630 = vset.pattern.permute.xlu0 0
  %631 = vperm.xlu0 %630, %v353
  %v632 = vpop.permute.xlu0 %631
  %635 = vset.pattern.permute.xlu0 0
  %636 = vperm.xlu0 %635, %v354
  %v637 = vpop.permute.xlu0 %636
  %640 = vset.pattern.permute.xlu0 0
  %641 = vperm.xlu0 %640, %v355
  %v642 = vpop.permute.xlu0 %641
  %645 = vset.pattern.permute.xlu0 0
  %646 = vperm.xlu0 %645, %v356
  %v647 = vpop.permute.xlu0 %646
  %650 = vset.pattern.permute.xlu0 0
  %651 = vperm.xlu0 %650, %v357
  %v652 = vpop.permute.xlu0 %651
  %655 = vset.pattern.permute.xlu0 0
  %656 = vperm.xlu0 %655, %v358
  %v657 = vpop.permute.xlu0 %656
  %660 = vset.pattern.permute.xlu0 0
  %661 = vperm.xlu0 %660, %v359
  %v662 = vpop.permute.xlu0 %661
  %665 = vset.pattern.permute.xlu0 0
  %666 = vperm.xlu0 %665, %v360
  %v667 = vpop.permute.xlu0 %666
  %670 = vset.pattern.permute.xlu0 0
  %671 = vperm.xlu0 %670, %v361
  %v672 = vpop.permute.xlu0 %671
  %675 = vset.pattern.permute.xlu0 0
  %676 = vperm.xlu0 %675, %v362
  %v677 = vpop.permute.xlu0 %676
  %680 = vset.pattern.permute.xlu0 0
  %681 = vperm.xlu0 %680, %v363
  %v682 = vpop.permute.xlu0 %681
  %s684 = scalar_lea.vmem %s2, 512
  %685 = vst.msk [vmem:[%s684] sm:$0xff] %vm235, %v367
  %686 = vst.msk [vmem:[%s684 + $0x8] sm:$0xff] %vm235, %v372
  %687 = vst.msk [vmem:[%s684 + $0x10] sm:$0xff] %vm235, %v377
  %688 = vst.msk [vmem:[%s684 + $0x18] sm:$0xff] %vm235, %v382
  %689 = vst.msk [vmem:[%s684 + $0x20] sm:$0xff] %vm235, %v387
  %690 = vst.msk [vmem:[%s684 + $0x28] sm:$0xff] %vm235, %v392
  %691 = vst.msk [vmem:[%s684 + $0x30] sm:$0xff] %vm235, %v397
  %692 = vst.msk [vmem:[%s684 + $0x38] sm:$0xff] %vm235, %v402
  %693 = vst.msk [vmem:[%s684 + $0x40] sm:$0xff] %vm235, %v407
  %694 = vst.msk [vmem:[%s684 + $0x48] sm:$0xff] %vm235, %v412
  %695 = vst.msk [vmem:[%s684 + $0x50] sm:$0xff] %vm235, %v417
  %696 = vst.msk [vmem:[%s684 + $0x58] sm:$0xff] %vm235, %v422
  %697 = vst.msk [vmem:[%s684 + $0x60] sm:$0xff] %vm235, %v427
  %698 = vst.msk [vmem:[%s684 + $0x68] sm:$0xff] %vm235, %v432
  %699 = vst.msk [vmem:[%s684 + $0x70] sm:$0xff] %vm235, %v437
  %700 = vst.msk [vmem:[%s684 + $0x78] sm:$0xff] %vm235, %v442
  %701 = vst.msk [vmem:[%s684 + $0x80] sm:$0xff] %vm235, %v447
  %702 = vst.msk [vmem:[%s684 + $0x88] sm:$0xff] %vm235, %v452
  %703 = vst.msk [vmem:[%s684 + $0x90] sm:$0xff] %vm235, %v457
  %704 = vst.msk [vmem:[%s684 + $0x98] sm:$0xff] %vm235, %v462
  %705 = vst.msk [vmem:[%s684 + $0xa0] sm:$0xff] %vm235, %v467
  %706 = vst.msk [vmem:[%s684 + $0xa8] sm:$0xff] %vm235, %v472
  %707 = vst.msk [vmem:[%s684 + $0xb0] sm:$0xff] %vm235, %v477
  %708 = vst.msk [vmem:[%s684 + $0xb8] sm:$0xff] %vm235, %v482
  %709 = vst.msk [vmem:[%s684 + $0xc0] sm:$0xff] %vm235, %v487
  %710 = vst.msk [vmem:[%s684 + $0xc8] sm:$0xff] %vm235, %v492
  %711 = vst.msk [vmem:[%s684 + $0xd0] sm:$0xff] %vm235, %v497
  %712 = vst.msk [vmem:[%s684 + $0xd8] sm:$0xff] %vm235, %v502
  %713 = vst.msk [vmem:[%s684 + $0xe0] sm:$0xff] %vm235, %v507
  %714 = vst.msk [vmem:[%s684 + $0xe8] sm:$0xff] %vm235, %v512
  %715 = vst.msk [vmem:[%s684 + $0xf0] sm:$0xff] %vm235, %v517
  %716 = vst.msk [vmem:[%s684 + $0xf8] sm:$0xff] %vm235, %v522
  %717 = vst.msk [vmem:[%s684 + $0x100] sm:$0xff] %vm235, %v527
  %718 = vst.msk [vmem:[%s684 + $0x108] sm:$0xff] %vm235, %v532
  %719 = vst.msk [vmem:[%s684 + $0x110] sm:$0xff] %vm235, %v537
  %720 = vst.msk [vmem:[%s684 + $0x118] sm:$0xff] %vm235, %v542
  %721 = vst.msk [vmem:[%s684 + $0x120] sm:$0xff] %vm235, %v547
  %722 = vst.msk [vmem:[%s684 + $0x128] sm:$0xff] %vm235, %v552
  %723 = vst.msk [vmem:[%s684 + $0x130] sm:$0xff] %vm235, %v557
  %724 = vst.msk [vmem:[%s684 + $0x138] sm:$0xff] %vm235, %v562
  %725 = vst.msk [vmem:[%s684 + $0x140] sm:$0xff] %vm235, %v567
  %726 = vst.msk [vmem:[%s684 + $0x148] sm:$0xff] %vm235, %v572
  %727 = vst.msk [vmem:[%s684 + $0x150] sm:$0xff] %vm235, %v577
  %728 = vst.msk [vmem:[%s684 + $0x158] sm:$0xff] %vm235, %v582
  %729 = vst.msk [vmem:[%s684 + $0x160] sm:$0xff] %vm235, %v587
  %730 = vst.msk [vmem:[%s684 + $0x168] sm:$0xff] %vm235, %v592
  %731 = vst.msk [vmem:[%s684 + $0x170] sm:$0xff] %vm235, %v597
  %732 = vst.msk [vmem:[%s684 + $0x178] sm:$0xff] %vm235, %v602
  %733 = vst.msk [vmem:[%s684 + $0x180] sm:$0xff] %vm235, %v607
  %734 = vst.msk [vmem:[%s684 + $0x188] sm:$0xff] %vm235, %v612
  %735 = vst.msk [vmem:[%s684 + $0x190] sm:$0xff] %vm235, %v617
  %736 = vst.msk [vmem:[%s684 + $0x198] sm:$0xff] %vm235, %v622
  %737 = vst.msk [vmem:[%s684 + $0x1a0] sm:$0xff] %vm235, %v627
  %738 = vst.msk [vmem:[%s684 + $0x1a8] sm:$0xff] %vm235, %v632
  %739 = vst.msk [vmem:[%s684 + $0x1b0] sm:$0xff] %vm235, %v637
  %740 = vst.msk [vmem:[%s684 + $0x1b8] sm:$0xff] %vm235, %v642
  %741 = vst.msk [vmem:[%s684 + $0x1c0] sm:$0xff] %vm235, %v647
  %742 = vst.msk [vmem:[%s684 + $0x1c8] sm:$0xff] %vm235, %v652
  %743 = vst.msk [vmem:[%s684 + $0x1d0] sm:$0xff] %vm235, %v657
  %744 = vst.msk [vmem:[%s684 + $0x1d8] sm:$0xff] %vm235, %v662
  %745 = vst.msk [vmem:[%s684 + $0x1e0] sm:$0xff] %vm235, %v667
  %746 = vst.msk [vmem:[%s684 + $0x1e8] sm:$0xff] %vm235, %v672
  %747 = vst.msk [vmem:[%s684 + $0x1f0] sm:$0xff] %vm235, %v677
  %748 = vst.msk [vmem:[%s684 + $0x1f8] sm:$0xff] %vm235, %v682
  // Predicated region
  $region10: #{tpu_custom_call.1} parent=0 // pred_check
    _
  $region11: #{tpu_custom_call.1} parent=0 // pred_check_branch
    %750 = sbr.rel (0) target = $region13
  $region12: #{tpu_custom_call.1} parent=0 // pred_region
    _
  $region13: #{tpu_custom_call.1} parent=0 // pred_fallthru
    _
  // Predicated region
  $region14: #{tpu_custom_call.1} parent=0 // pred_check
    _
  $region15: #{tpu_custom_call.1} parent=0 // pred_check_branch
    %752 = sbr.rel (0) target = $region17
  $region16: #{tpu_custom_call.1} parent=0 // pred_region
    _
  $region17: #{tpu_custom_call.1} parent=0 // pred_fallthru
    _

</llo_original>
